<compile_context>
chip_gen: v5e
topology: v5e:2x2
jax: 0.10.0
libtpu: 0.0.40
codegen_flags: <defaults>
</compile_context>

<pallas_src>
import jax
import jax.numpy as jnp
from jax import lax
from jax.experimental import pallas as pl
from jax.experimental.pallas import tpu as pltpu

LANES = 128            # lane width
SUBS = 8               # sublanes per tile
TILE = SUBS * LANES    # 1024 ROIs per grid step
NUM_SAMPLES = 128      # total sampled proposals
MAX_POS = 32           # max positive proposals


def _iou_max_kernel(bbox_smem, rois_ref, max_ref, arg_ref):
    """Per-ROI max IoU and argmax over the GT boxes (divide-free inner loop).

    bbox_smem : (4*G,)     f32 in SMEM, flattened (x1, y1, x2, y2) per GT box
    rois_ref  : (4, 8, 128) f32 in VMEM, coordinate-planar tile of 1024 ROIs
    max_ref   : (8, 128)   f32
    arg_ref   : (8, 128)   i32
    """
    x1 = rois_ref[0]
    y1 = rois_ref[1]
    x2 = rois_ref[2]
    y2 = rois_ref[3]
    area_r = (x2 - x1) * (y2 - y1)

    # IoU = inter / denom; carry numerator/denominator separately so the
    # loop-carried dependence is mul + cmp + select only (no divides).
    best_inter = jnp.zeros(x1.shape, dtype=jnp.float32)
    best_denom = jnp.ones(x1.shape, dtype=jnp.float32)
    best_idx = jnp.zeros(x1.shape, dtype=jnp.int32)

    g_count = bbox_smem.shape[0] // 4
    for g in range(g_count):  # static unrolled loop over the (small) GT set
        bx1 = bbox_smem[4 * g + 0]
        by1 = bbox_smem[4 * g + 1]
        bx2 = bbox_smem[4 * g + 2]
        by2 = bbox_smem[4 * g + 3]
        area_b = (bx2 - bx1) * (by2 - by1)
        iw = jnp.maximum(jnp.minimum(x2, bx2) - jnp.maximum(x1, bx1), 0.0)
        ih = jnp.maximum(jnp.minimum(y2, by2) - jnp.maximum(y1, by1), 0.0)
        inter = iw * ih
        denom = area_r + area_b - inter
        # inter/denom > best_inter/best_denom  (denoms are non-negative)
        upd = inter * best_denom > best_inter * denom
        best_inter = jnp.where(upd, inter, best_inter)
        best_denom = jnp.where(upd, denom, best_denom)
        best_idx = jnp.where(upd, jnp.int32(g), best_idx)

    # Single exact divide at the end (keeps the 0.5 threshold exact).
    max_ref[...] = best_inter / best_denom
    arg_ref[...] = best_idx


def _iou_max_argmax(rois, bbox_flat):
    """rois: (R, 4) f32, bbox_flat: (4*G,) f32 -> ((R,) f32 max, (R,) i32 argmax)."""
    R = rois.shape[0]
    r_pad = ((R + TILE - 1) // TILE) * TILE
    nr = r_pad // LANES
    rois_pad = jnp.pad(rois, ((0, r_pad - R), (0, 0)))
    planes = rois_pad.T.reshape(4, nr, LANES)  # coordinate-planar layout

    mx, am = pl.pallas_call(
        _iou_max_kernel,
        out_shape=(
            jax.ShapeDtypeStruct((nr, LANES), jnp.float32),
            jax.ShapeDtypeStruct((nr, LANES), jnp.int32),
        ),
        grid=(nr // SUBS,),
        in_specs=[
            pl.BlockSpec(memory_space=pltpu.MemorySpace.SMEM),      # flat GT table
            pl.BlockSpec((4, SUBS, LANES), lambda i: (0, i, 0)),    # 1024-ROI tile
        ],
        out_specs=(
            pl.BlockSpec((SUBS, LANES), lambda i: (i, 0)),
            pl.BlockSpec((SUBS, LANES), lambda i: (i, 0)),
        ),
        compiler_params=pltpu.CompilerParams(dimension_semantics=("parallel",)),
    )(bbox_flat, planes)
    return mx.reshape(r_pad)[:R], am.reshape(r_pad)[:R]


def _encode(gt_keep, sample_rois):
    """xy->cxcy, delta-encode and (x - mean)/std normalize (plain JAX; 128x4
    floats — XLA fuses this with the gathers, a pallas_call would be pure
    launch overhead)."""
    gcx = (gt_keep[:, 0] + gt_keep[:, 2]) * 0.5
    gcy = (gt_keep[:, 1] + gt_keep[:, 3]) * 0.5
    gw = gt_keep[:, 2] - gt_keep[:, 0]
    gh = gt_keep[:, 3] - gt_keep[:, 1]
    rcx = (sample_rois[:, 0] + sample_rois[:, 2]) * 0.5
    rcy = (sample_rois[:, 1] + sample_rois[:, 3]) * 0.5
    rw = sample_rois[:, 2] - sample_rois[:, 0]
    rh = sample_rois[:, 3] - sample_rois[:, 1]

    reg = jnp.stack(
        [(gcx - rcx) / rw, (gcy - rcy) / rh, jnp.log(gw / rw), jnp.log(gh / rh)],
        axis=-1,
    )
    std = jnp.array([0.1, 0.1, 0.2, 0.2], dtype=jnp.float32)
    return reg / std


@jax.jit
def fast_rcnn_target_maker(bbox, label, rois, key):
    """JAX/Pallas port of FastRcnnTargetMaker.forward.

    bbox : (1, G, 4) f32 ground-truth boxes (xyxy)
    label: (1, G)    i32 ground-truth labels
    rois : (R, 4)    f32 proposals (xyxy), R >= 128
    key  : PRNG key replacing torch.randperm's implicit randomness

    Returns (cls (128,) i32, reg (128, 4) f32, sample_rois (128, 4) f32).
    """
    bbox0 = bbox[0].astype(jnp.float32)          # (G, 4)
    label0 = label[0].astype(jnp.int32)          # (G,)
    rois = rois.astype(jnp.float32)              # (R, 4)
    R = rois.shape[0]

    # --- hot path: IoU + per-ROI max/argmax (Pallas) ---
    iou_max, iou_argmax = _iou_max_argmax(rois, bbox0.reshape(-1))

    # --- pos/neg subsampling (plain JAX; replaces torch.randperm) ---
    pos_mask = iou_max >= 0.5
    neg_mask = (iou_max < 0.5) & (iou_max >= 0.0)
    n_pos = jnp.minimum(jnp.sum(pos_mask), MAX_POS).astype(jnp.int32)

    k_pos, k_neg = jax.random.split(key)
    rp = jax.random.uniform(k_pos, (R,))
    rn = jax.random.uniform(k_neg, (R,))
    # top_k over masked random keys == random subset in random order (randperm[:k]),
    # far cheaper than two full-length argsorts at realistic R.
    _, pos_order = lax.top_k(jnp.where(pos_mask, rp, -jnp.inf), NUM_SAMPLES)
    _, neg_order = lax.top_k(jnp.where(neg_mask, rn, -jnp.inf), NUM_SAMPLES)

    ar = jnp.arange(NUM_SAMPLES)
    keep = jnp.where(
        ar < n_pos,
        pos_order[ar],
        neg_order[jnp.clip(ar - n_pos, 0, NUM_SAMPLES - 1)],
    )
    # TODO(synk): the torch runtime assert (enough negatives so n_pos + n_neg == 128)
    # has no traced equivalent; we assume R provides >= 128 - n_pos negatives.

    keep_argmax = iou_argmax[keep]                          # gather only the 128 kept
    cls_keep = jnp.where(ar < n_pos, label0[keep_argmax] + 1, 0).astype(jnp.int32)
    sample_rois = rois[keep]
    gt_keep = bbox0[keep_argmax]

    reg = _encode(gt_keep, sample_rois)

    return cls_keep, reg, sample_rois


if __name__ == "__main__":
    key = jax.random.PRNGKey(0)
    kb, kw, kl, kr, krw, ks = jax.random.split(key, 6)

    G, R = 8, 2048  # 2 grid steps of 1024 ROIs -> both v7x TensorCores get work
    # Ground-truth boxes (normalized xyxy with positive width/height).
    gxy = jax.random.uniform(kb, (G, 2), minval=0.0, maxval=0.6)
    gwh = jax.random.uniform(kw, (G, 2), minval=0.10, maxval=0.35)
    bbox = jnp.concatenate([gxy, gxy + gwh], axis=-1)[None]          # (1, G, 4)
    label = jax.random.randint(kl, (1, G), 0, 20, dtype=jnp.int32)   # (1, G)

    # Proposals.
    rxy = jax.random.uniform(kr, (R, 2), minval=0.0, maxval=0.6)
    rwh = jax.random.uniform(krw, (R, 2), minval=0.05, maxval=0.35)
    rois = jnp.concatenate([rxy, rxy + rwh], axis=-1)                # (R, 4)

    cls_t, reg_t, sroi = fast_rcnn_target_maker(bbox, label, rois, ks)
    jax.block_until_ready((cls_t, reg_t, sroi))

    assert cls_t.shape == (NUM_SAMPLES,) and cls_t.dtype == jnp.int32
    assert reg_t.shape == (NUM_SAMPLES, 4) and reg_t.dtype == jnp.float32
    assert sroi.shape == (NUM_SAMPLES, 4)
    assert bool(jnp.all(jnp.isfinite(reg_t)))
    assert bool(jnp.all((cls_t >= 0) & (cls_t <= 20)))

    print("KERNEL_OK")
</pallas_src>

<mosaic_0001>
module attributes {stable_mosaic.version = 11 : i64} {
  func.func @_iou_max_kernel(%arg0: i32, %arg1: memref<32xf32, #tpu.memory_space<smem>>, %arg2: memref<4x8x128xf32, #tpu.memory_space<vmem>>, %arg3: memref<8x128xf32, #tpu.memory_space<vmem>>, %arg4: memref<8x128xi32, #tpu.memory_space<vmem>>) attributes {dimension_semantics = [#tpu.dimension_semantics<parallel>], iteration_bounds = array<i64: 2>, scalar_prefetch = 0 : i64, scratch_operands = 0 : i64, tpu.core_type = #tpu.core_type<tc>, window_params = [{transform_indices = @transform_0, window_bounds = array<i64: 32>}, {transform_indices = @transform_1, window_bounds = array<i64: 4, 8, 128>}, {transform_indices = @transform_2, window_bounds = array<i64: 8, 128>}, {transform_indices = @transform_3, window_bounds = array<i64: 8, 128>}]} {
    %c0 = arith.constant 0 : index
    %c0_0 = arith.constant 0 : index
    %c0_1 = arith.constant 0 : index
    %0 = vector.load %arg2[%c0, %c0_0, %c0_1] : memref<4x8x128xf32, #tpu.memory_space<vmem>>, vector<1x8x128xf32>
    %1 = vector.shape_cast %0 : vector<1x8x128xf32> to vector<8x128xf32>
    %c1 = arith.constant 1 : index
    %c0_2 = arith.constant 0 : index
    %c0_3 = arith.constant 0 : index
    %2 = vector.load %arg2[%c1, %c0_2, %c0_3] : memref<4x8x128xf32, #tpu.memory_space<vmem>>, vector<1x8x128xf32>
    %3 = vector.shape_cast %2 : vector<1x8x128xf32> to vector<8x128xf32>
    %c2 = arith.constant 2 : index
    %c0_4 = arith.constant 0 : index
    %c0_5 = arith.constant 0 : index
    %4 = vector.load %arg2[%c2, %c0_4, %c0_5] : memref<4x8x128xf32, #tpu.memory_space<vmem>>, vector<1x8x128xf32>
    %5 = vector.shape_cast %4 : vector<1x8x128xf32> to vector<8x128xf32>
    %c3 = arith.constant 3 : index
    %c0_6 = arith.constant 0 : index
    %c0_7 = arith.constant 0 : index
    %6 = vector.load %arg2[%c3, %c0_6, %c0_7] : memref<4x8x128xf32, #tpu.memory_space<vmem>>, vector<1x8x128xf32>
    %7 = vector.shape_cast %6 : vector<1x8x128xf32> to vector<8x128xf32>
    %8 = arith.subf %5, %1 : vector<8x128xf32>
    %9 = arith.subf %7, %3 : vector<8x128xf32>
    %10 = arith.mulf %8, %9 : vector<8x128xf32>
    %cst = arith.constant 0.000000e+00 : f32
    %11 = vector.broadcast %cst : f32 to vector<8x128xf32>
    %cst_8 = arith.constant 1.000000e+00 : f32
    %12 = vector.broadcast %cst_8 : f32 to vector<8x128xf32>
    %c0_i32 = arith.constant 0 : i32
    %13 = vector.broadcast %c0_i32 : i32 to vector<8x128xi32>
    %c0_9 = arith.constant 0 : index
    %14 = memref.load %arg1[%c0_9] : memref<32xf32, #tpu.memory_space<smem>>
    %c1_10 = arith.constant 1 : index
    %15 = memref.load %arg1[%c1_10] : memref<32xf32, #tpu.memory_space<smem>>
    %c2_11 = arith.constant 2 : index
    %16 = memref.load %arg1[%c2_11] : memref<32xf32, #tpu.memory_space<smem>>
    %c3_12 = arith.constant 3 : index
    %17 = memref.load %arg1[%c3_12] : memref<32xf32, #tpu.memory_space<smem>>
    %18 = arith.subf %16, %14 : f32
    %19 = arith.subf %17, %15 : f32
    %20 = arith.mulf %18, %19 : f32
    %21 = vector.broadcast %16 : f32 to vector<8x128xf32>
    %22 = arith.minimumf %5, %21 : vector<8x128xf32>
    %23 = vector.broadcast %14 : f32 to vector<8x128xf32>
    %24 = arith.maximumf %1, %23 : vector<8x128xf32>
    %25 = arith.subf %22, %24 : vector<8x128xf32>
    %cst_13 = arith.constant 0.000000e+00 : f32
    %26 = vector.broadcast %cst_13 : f32 to vector<8x128xf32>
    %27 = arith.maximumf %25, %26 : vector<8x128xf32>
    %28 = vector.broadcast %17 : f32 to vector<8x128xf32>
    %29 = arith.minimumf %7, %28 : vector<8x128xf32>
    %30 = vector.broadcast %15 : f32 to vector<8x128xf32>
    %31 = arith.maximumf %3, %30 : vector<8x128xf32>
    %32 = arith.subf %29, %31 : vector<8x128xf32>
    %cst_14 = arith.constant 0.000000e+00 : f32
    %33 = vector.broadcast %cst_14 : f32 to vector<8x128xf32>
    %34 = arith.maximumf %32, %33 : vector<8x128xf32>
    %35 = arith.mulf %27, %34 : vector<8x128xf32>
    %36 = vector.broadcast %20 : f32 to vector<8x128xf32>
    %37 = arith.addf %10, %36 : vector<8x128xf32>
    %38 = arith.subf %37, %35 : vector<8x128xf32>
    %39 = arith.mulf %35, %12 : vector<8x128xf32>
    %40 = arith.mulf %11, %38 : vector<8x128xf32>
    %41 = arith.cmpf ogt, %39, %40 : vector<8x128xf32>
    %42 = arith.select %41, %35, %11 : vector<8x128xi1>, vector<8x128xf32>
    %43 = arith.select %41, %38, %12 : vector<8x128xi1>, vector<8x128xf32>
    %c0_i32_15 = arith.constant 0 : i32
    %44 = vector.broadcast %c0_i32_15 : i32 to vector<8x128xi32>
    %45 = arith.select %41, %44, %13 : vector<8x128xi1>, vector<8x128xi32>
    %c4 = arith.constant 4 : index
    %46 = memref.load %arg1[%c4] : memref<32xf32, #tpu.memory_space<smem>>
    %c5 = arith.constant 5 : index
    %47 = memref.load %arg1[%c5] : memref<32xf32, #tpu.memory_space<smem>>
    %c6 = arith.constant 6 : index
    %48 = memref.load %arg1[%c6] : memref<32xf32, #tpu.memory_space<smem>>
    %c7 = arith.constant 7 : index
    %49 = memref.load %arg1[%c7] : memref<32xf32, #tpu.memory_space<smem>>
    %50 = arith.subf %48, %46 : f32
    %51 = arith.subf %49, %47 : f32
    %52 = arith.mulf %50, %51 : f32
    %53 = vector.broadcast %48 : f32 to vector<8x128xf32>
    %54 = arith.minimumf %5, %53 : vector<8x128xf32>
    %55 = vector.broadcast %46 : f32 to vector<8x128xf32>
    %56 = arith.maximumf %1, %55 : vector<8x128xf32>
    %57 = arith.subf %54, %56 : vector<8x128xf32>
    %cst_16 = arith.constant 0.000000e+00 : f32
    %58 = vector.broadcast %cst_16 : f32 to vector<8x128xf32>
    %59 = arith.maximumf %57, %58 : vector<8x128xf32>
    %60 = vector.broadcast %49 : f32 to vector<8x128xf32>
    %61 = arith.minimumf %7, %60 : vector<8x128xf32>
    %62 = vector.broadcast %47 : f32 to vector<8x128xf32>
    %63 = arith.maximumf %3, %62 : vector<8x128xf32>
    %64 = arith.subf %61, %63 : vector<8x128xf32>
    %cst_17 = arith.constant 0.000000e+00 : f32
    %65 = vector.broadcast %cst_17 : f32 to vector<8x128xf32>
    %66 = arith.maximumf %64, %65 : vector<8x128xf32>
    %67 = arith.mulf %59, %66 : vector<8x128xf32>
    %68 = vector.broadcast %52 : f32 to vector<8x128xf32>
    %69 = arith.addf %10, %68 : vector<8x128xf32>
    %70 = arith.subf %69, %67 : vector<8x128xf32>
    %71 = arith.mulf %67, %43 : vector<8x128xf32>
    %72 = arith.mulf %42, %70 : vector<8x128xf32>
    %73 = arith.cmpf ogt, %71, %72 : vector<8x128xf32>
    %74 = arith.select %73, %67, %42 : vector<8x128xi1>, vector<8x128xf32>
    %75 = arith.select %73, %70, %43 : vector<8x128xi1>, vector<8x128xf32>
    %c1_i32 = arith.constant 1 : i32
    %76 = vector.broadcast %c1_i32 : i32 to vector<8x128xi32>
    %77 = arith.select %73, %76, %45 : vector<8x128xi1>, vector<8x128xi32>
    %c8 = arith.constant 8 : index
    %78 = memref.load %arg1[%c8] : memref<32xf32, #tpu.memory_space<smem>>
    %c9 = arith.constant 9 : index
    %79 = memref.load %arg1[%c9] : memref<32xf32, #tpu.memory_space<smem>>
    %c10 = arith.constant 10 : index
    %80 = memref.load %arg1[%c10] : memref<32xf32, #tpu.memory_space<smem>>
    %c11 = arith.constant 11 : index
    %81 = memref.load %arg1[%c11] : memref<32xf32, #tpu.memory_space<smem>>
    %82 = arith.subf %80, %78 : f32
    %83 = arith.subf %81, %79 : f32
    %84 = arith.mulf %82, %83 : f32
    %85 = vector.broadcast %80 : f32 to vector<8x128xf32>
    %86 = arith.minimumf %5, %85 : vector<8x128xf32>
    %87 = vector.broadcast %78 : f32 to vector<8x128xf32>
    %88 = arith.maximumf %1, %87 : vector<8x128xf32>
    %89 = arith.subf %86, %88 : vector<8x128xf32>
    %cst_18 = arith.constant 0.000000e+00 : f32
    %90 = vector.broadcast %cst_18 : f32 to vector<8x128xf32>
    %91 = arith.maximumf %89, %90 : vector<8x128xf32>
    %92 = vector.broadcast %81 : f32 to vector<8x128xf32>
    %93 = arith.minimumf %7, %92 : vector<8x128xf32>
    %94 = vector.broadcast %79 : f32 to vector<8x128xf32>
    %95 = arith.maximumf %3, %94 : vector<8x128xf32>
    %96 = arith.subf %93, %95 : vector<8x128xf32>
    %cst_19 = arith.constant 0.000000e+00 : f32
    %97 = vector.broadcast %cst_19 : f32 to vector<8x128xf32>
    %98 = arith.maximumf %96, %97 : vector<8x128xf32>
    %99 = arith.mulf %91, %98 : vector<8x128xf32>
    %100 = vector.broadcast %84 : f32 to vector<8x128xf32>
    %101 = arith.addf %10, %100 : vector<8x128xf32>
    %102 = arith.subf %101, %99 : vector<8x128xf32>
    %103 = arith.mulf %99, %75 : vector<8x128xf32>
    %104 = arith.mulf %74, %102 : vector<8x128xf32>
    %105 = arith.cmpf ogt, %103, %104 : vector<8x128xf32>
    %106 = arith.select %105, %99, %74 : vector<8x128xi1>, vector<8x128xf32>
    %107 = arith.select %105, %102, %75 : vector<8x128xi1>, vector<8x128xf32>
    %c2_i32 = arith.constant 2 : i32
    %108 = vector.broadcast %c2_i32 : i32 to vector<8x128xi32>
    %109 = arith.select %105, %108, %77 : vector<8x128xi1>, vector<8x128xi32>
    %c12 = arith.constant 12 : index
    %110 = memref.load %arg1[%c12] : memref<32xf32, #tpu.memory_space<smem>>
    %c13 = arith.constant 13 : index
    %111 = memref.load %arg1[%c13] : memref<32xf32, #tpu.memory_space<smem>>
    %c14 = arith.constant 14 : index
    %112 = memref.load %arg1[%c14] : memref<32xf32, #tpu.memory_space<smem>>
    %c15 = arith.constant 15 : index
    %113 = memref.load %arg1[%c15] : memref<32xf32, #tpu.memory_space<smem>>
    %114 = arith.subf %112, %110 : f32
    %115 = arith.subf %113, %111 : f32
    %116 = arith.mulf %114, %115 : f32
    %117 = vector.broadcast %112 : f32 to vector<8x128xf32>
    %118 = arith.minimumf %5, %117 : vector<8x128xf32>
    %119 = vector.broadcast %110 : f32 to vector<8x128xf32>
    %120 = arith.maximumf %1, %119 : vector<8x128xf32>
    %121 = arith.subf %118, %120 : vector<8x128xf32>
    %cst_20 = arith.constant 0.000000e+00 : f32
    %122 = vector.broadcast %cst_20 : f32 to vector<8x128xf32>
    %123 = arith.maximumf %121, %122 : vector<8x128xf32>
    %124 = vector.broadcast %113 : f32 to vector<8x128xf32>
    %125 = arith.minimumf %7, %124 : vector<8x128xf32>
    %126 = vector.broadcast %111 : f32 to vector<8x128xf32>
    %127 = arith.maximumf %3, %126 : vector<8x128xf32>
    %128 = arith.subf %125, %127 : vector<8x128xf32>
    %cst_21 = arith.constant 0.000000e+00 : f32
    %129 = vector.broadcast %cst_21 : f32 to vector<8x128xf32>
    %130 = arith.maximumf %128, %129 : vector<8x128xf32>
    %131 = arith.mulf %123, %130 : vector<8x128xf32>
    %132 = vector.broadcast %116 : f32 to vector<8x128xf32>
    %133 = arith.addf %10, %132 : vector<8x128xf32>
    %134 = arith.subf %133, %131 : vector<8x128xf32>
    %135 = arith.mulf %131, %107 : vector<8x128xf32>
    %136 = arith.mulf %106, %134 : vector<8x128xf32>
    %137 = arith.cmpf ogt, %135, %136 : vector<8x128xf32>
    %138 = arith.select %137, %131, %106 : vector<8x128xi1>, vector<8x128xf32>
    %139 = arith.select %137, %134, %107 : vector<8x128xi1>, vector<8x128xf32>
    %c3_i32 = arith.constant 3 : i32
    %140 = vector.broadcast %c3_i32 : i32 to vector<8x128xi32>
    %141 = arith.select %137, %140, %109 : vector<8x128xi1>, vector<8x128xi32>
    %c16 = arith.constant 16 : index
    %142 = memref.load %arg1[%c16] : memref<32xf32, #tpu.memory_space<smem>>
    %c17 = arith.constant 17 : index
    %143 = memref.load %arg1[%c17] : memref<32xf32, #tpu.memory_space<smem>>
    %c18 = arith.constant 18 : index
    %144 = memref.load %arg1[%c18] : memref<32xf32, #tpu.memory_space<smem>>
    %c19 = arith.constant 19 : index
    %145 = memref.load %arg1[%c19] : memref<32xf32, #tpu.memory_space<smem>>
    %146 = arith.subf %144, %142 : f32
    %147 = arith.subf %145, %143 : f32
    %148 = arith.mulf %146, %147 : f32
    %149 = vector.broadcast %144 : f32 to vector<8x128xf32>
    %150 = arith.minimumf %5, %149 : vector<8x128xf32>
    %151 = vector.broadcast %142 : f32 to vector<8x128xf32>
    %152 = arith.maximumf %1, %151 : vector<8x128xf32>
    %153 = arith.subf %150, %152 : vector<8x128xf32>
    %cst_22 = arith.constant 0.000000e+00 : f32
    %154 = vector.broadcast %cst_22 : f32 to vector<8x128xf32>
    %155 = arith.maximumf %153, %154 : vector<8x128xf32>
    %156 = vector.broadcast %145 : f32 to vector<8x128xf32>
    %157 = arith.minimumf %7, %156 : vector<8x128xf32>
    %158 = vector.broadcast %143 : f32 to vector<8x128xf32>
    %159 = arith.maximumf %3, %158 : vector<8x128xf32>
    %160 = arith.subf %157, %159 : vector<8x128xf32>
    %cst_23 = arith.constant 0.000000e+00 : f32
    %161 = vector.broadcast %cst_23 : f32 to vector<8x128xf32>
    %162 = arith.maximumf %160, %161 : vector<8x128xf32>
    %163 = arith.mulf %155, %162 : vector<8x128xf32>
    %164 = vector.broadcast %148 : f32 to vector<8x128xf32>
    %165 = arith.addf %10, %164 : vector<8x128xf32>
    %166 = arith.subf %165, %163 : vector<8x128xf32>
    %167 = arith.mulf %163, %139 : vector<8x128xf32>
    %168 = arith.mulf %138, %166 : vector<8x128xf32>
    %169 = arith.cmpf ogt, %167, %168 : vector<8x128xf32>
    %170 = arith.select %169, %163, %138 : vector<8x128xi1>, vector<8x128xf32>
    %171 = arith.select %169, %166, %139 : vector<8x128xi1>, vector<8x128xf32>
    %c4_i32 = arith.constant 4 : i32
    %172 = vector.broadcast %c4_i32 : i32 to vector<8x128xi32>
    %173 = arith.select %169, %172, %141 : vector<8x128xi1>, vector<8x128xi32>
    %c20 = arith.constant 20 : index
    %174 = memref.load %arg1[%c20] : memref<32xf32, #tpu.memory_space<smem>>
    %c21 = arith.constant 21 : index
    %175 = memref.load %arg1[%c21] : memref<32xf32, #tpu.memory_space<smem>>
    %c22 = arith.constant 22 : index
    %176 = memref.load %arg1[%c22] : memref<32xf32, #tpu.memory_space<smem>>
    %c23 = arith.constant 23 : index
    %177 = memref.load %arg1[%c23] : memref<32xf32, #tpu.memory_space<smem>>
    %178 = arith.subf %176, %174 : f32
    %179 = arith.subf %177, %175 : f32
    %180 = arith.mulf %178, %179 : f32
    %181 = vector.broadcast %176 : f32 to vector<8x128xf32>
    %182 = arith.minimumf %5, %181 : vector<8x128xf32>
    %183 = vector.broadcast %174 : f32 to vector<8x128xf32>
    %184 = arith.maximumf %1, %183 : vector<8x128xf32>
    %185 = arith.subf %182, %184 : vector<8x128xf32>
    %cst_24 = arith.constant 0.000000e+00 : f32
    %186 = vector.broadcast %cst_24 : f32 to vector<8x128xf32>
    %187 = arith.maximumf %185, %186 : vector<8x128xf32>
    %188 = vector.broadcast %177 : f32 to vector<8x128xf32>
    %189 = arith.minimumf %7, %188 : vector<8x128xf32>
    %190 = vector.broadcast %175 : f32 to vector<8x128xf32>
    %191 = arith.maximumf %3, %190 : vector<8x128xf32>
    %192 = arith.subf %189, %191 : vector<8x128xf32>
    %cst_25 = arith.constant 0.000000e+00 : f32
    %193 = vector.broadcast %cst_25 : f32 to vector<8x128xf32>
    %194 = arith.maximumf %192, %193 : vector<8x128xf32>
    %195 = arith.mulf %187, %194 : vector<8x128xf32>
    %196 = vector.broadcast %180 : f32 to vector<8x128xf32>
    %197 = arith.addf %10, %196 : vector<8x128xf32>
    %198 = arith.subf %197, %195 : vector<8x128xf32>
    %199 = arith.mulf %195, %171 : vector<8x128xf32>
    %200 = arith.mulf %170, %198 : vector<8x128xf32>
    %201 = arith.cmpf ogt, %199, %200 : vector<8x128xf32>
    %202 = arith.select %201, %195, %170 : vector<8x128xi1>, vector<8x128xf32>
    %203 = arith.select %201, %198, %171 : vector<8x128xi1>, vector<8x128xf32>
    %c5_i32 = arith.constant 5 : i32
    %204 = vector.broadcast %c5_i32 : i32 to vector<8x128xi32>
    %205 = arith.select %201, %204, %173 : vector<8x128xi1>, vector<8x128xi32>
    %c24 = arith.constant 24 : index
    %206 = memref.load %arg1[%c24] : memref<32xf32, #tpu.memory_space<smem>>
    %c25 = arith.constant 25 : index
    %207 = memref.load %arg1[%c25] : memref<32xf32, #tpu.memory_space<smem>>
    %c26 = arith.constant 26 : index
    %208 = memref.load %arg1[%c26] : memref<32xf32, #tpu.memory_space<smem>>
    %c27 = arith.constant 27 : index
    %209 = memref.load %arg1[%c27] : memref<32xf32, #tpu.memory_space<smem>>
    %210 = arith.subf %208, %206 : f32
    %211 = arith.subf %209, %207 : f32
    %212 = arith.mulf %210, %211 : f32
    %213 = vector.broadcast %208 : f32 to vector<8x128xf32>
    %214 = arith.minimumf %5, %213 : vector<8x128xf32>
    %215 = vector.broadcast %206 : f32 to vector<8x128xf32>
    %216 = arith.maximumf %1, %215 : vector<8x128xf32>
    %217 = arith.subf %214, %216 : vector<8x128xf32>
    %cst_26 = arith.constant 0.000000e+00 : f32
    %218 = vector.broadcast %cst_26 : f32 to vector<8x128xf32>
    %219 = arith.maximumf %217, %218 : vector<8x128xf32>
    %220 = vector.broadcast %209 : f32 to vector<8x128xf32>
    %221 = arith.minimumf %7, %220 : vector<8x128xf32>
    %222 = vector.broadcast %207 : f32 to vector<8x128xf32>
    %223 = arith.maximumf %3, %222 : vector<8x128xf32>
    %224 = arith.subf %221, %223 : vector<8x128xf32>
    %cst_27 = arith.constant 0.000000e+00 : f32
    %225 = vector.broadcast %cst_27 : f32 to vector<8x128xf32>
    %226 = arith.maximumf %224, %225 : vector<8x128xf32>
    %227 = arith.mulf %219, %226 : vector<8x128xf32>
    %228 = vector.broadcast %212 : f32 to vector<8x128xf32>
    %229 = arith.addf %10, %228 : vector<8x128xf32>
    %230 = arith.subf %229, %227 : vector<8x128xf32>
    %231 = arith.mulf %227, %203 : vector<8x128xf32>
    %232 = arith.mulf %202, %230 : vector<8x128xf32>
    %233 = arith.cmpf ogt, %231, %232 : vector<8x128xf32>
    %234 = arith.select %233, %227, %202 : vector<8x128xi1>, vector<8x128xf32>
    %235 = arith.select %233, %230, %203 : vector<8x128xi1>, vector<8x128xf32>
    %c6_i32 = arith.constant 6 : i32
    %236 = vector.broadcast %c6_i32 : i32 to vector<8x128xi32>
    %237 = arith.select %233, %236, %205 : vector<8x128xi1>, vector<8x128xi32>
    %c28 = arith.constant 28 : index
    %238 = memref.load %arg1[%c28] : memref<32xf32, #tpu.memory_space<smem>>
    %c29 = arith.constant 29 : index
    %239 = memref.load %arg1[%c29] : memref<32xf32, #tpu.memory_space<smem>>
    %c30 = arith.constant 30 : index
    %240 = memref.load %arg1[%c30] : memref<32xf32, #tpu.memory_space<smem>>
    %c31 = arith.constant 31 : index
    %241 = memref.load %arg1[%c31] : memref<32xf32, #tpu.memory_space<smem>>
    %242 = arith.subf %240, %238 : f32
    %243 = arith.subf %241, %239 : f32
    %244 = arith.mulf %242, %243 : f32
    %245 = vector.broadcast %240 : f32 to vector<8x128xf32>
    %246 = arith.minimumf %5, %245 : vector<8x128xf32>
    %247 = vector.broadcast %238 : f32 to vector<8x128xf32>
    %248 = arith.maximumf %1, %247 : vector<8x128xf32>
    %249 = arith.subf %246, %248 : vector<8x128xf32>
    %cst_28 = arith.constant 0.000000e+00 : f32
    %250 = vector.broadcast %cst_28 : f32 to vector<8x128xf32>
    %251 = arith.maximumf %249, %250 : vector<8x128xf32>
    %252 = vector.broadcast %241 : f32 to vector<8x128xf32>
    %253 = arith.minimumf %7, %252 : vector<8x128xf32>
    %254 = vector.broadcast %239 : f32 to vector<8x128xf32>
    %255 = arith.maximumf %3, %254 : vector<8x128xf32>
    %256 = arith.subf %253, %255 : vector<8x128xf32>
    %cst_29 = arith.constant 0.000000e+00 : f32
    %257 = vector.broadcast %cst_29 : f32 to vector<8x128xf32>
    %258 = arith.maximumf %256, %257 : vector<8x128xf32>
    %259 = arith.mulf %251, %258 : vector<8x128xf32>
    %260 = vector.broadcast %244 : f32 to vector<8x128xf32>
    %261 = arith.addf %10, %260 : vector<8x128xf32>
    %262 = arith.subf %261, %259 : vector<8x128xf32>
    %263 = arith.mulf %259, %235 : vector<8x128xf32>
    %264 = arith.mulf %234, %262 : vector<8x128xf32>
    %265 = arith.cmpf ogt, %263, %264 : vector<8x128xf32>
    %266 = arith.select %265, %259, %234 : vector<8x128xi1>, vector<8x128xf32>
    %267 = arith.select %265, %262, %235 : vector<8x128xi1>, vector<8x128xf32>
    %c7_i32 = arith.constant 7 : i32
    %268 = vector.broadcast %c7_i32 : i32 to vector<8x128xi32>
    %269 = arith.select %265, %268, %237 : vector<8x128xi1>, vector<8x128xi32>
    %270 = arith.divf %266, %267 : vector<8x128xf32>
    %c0_30 = arith.constant 0 : index
    %c0_31 = arith.constant 0 : index
    %271 = vector.load %arg3[%c0_30, %c0_31] : memref<8x128xf32, #tpu.memory_space<vmem>>, vector<8x128xf32>
    tpu.vector_store %arg3[%c0_30, %c0_31], %270 {strides = array<i32>} : memref<8x128xf32, #tpu.memory_space<vmem>>, vector<8x128xf32>,
    %c0_32 = arith.constant 0 : index
    %c0_33 = arith.constant 0 : index
    %272 = vector.load %arg4[%c0_32, %c0_33] : memref<8x128xi32, #tpu.memory_space<vmem>>, vector<8x128xi32>
    tpu.vector_store %arg4[%c0_32, %c0_33], %269 {strides = array<i32>} : memref<8x128xi32, #tpu.memory_space<vmem>>, vector<8x128xi32>,
    return
  }
  func.func @transform_0(%arg0: i32) -> i32 {
    %c0_i32 = arith.constant 0 : i32
    %c0_i32_0 = arith.constant 0 : i32
    return %c0_i32 : i32
  }
  func.func @transform_1(%arg0: i32) -> (i32, i32, i32) {
    %c0_i32 = arith.constant 0 : i32
    %c0_i32_0 = arith.constant 0 : i32
    %c0_i32_1 = arith.constant 0 : i32
    return %c0_i32, %arg0, %c0_i32_0 : i32, i32, i32
  }
  func.func @transform_2(%arg0: i32) -> (i32, i32) {
    %c0_i32 = arith.constant 0 : i32
    %c0_i32_0 = arith.constant 0 : i32
    return %arg0, %c0_i32 : i32, i32
  }
  func.func @transform_3(%arg0: i32) -> (i32, i32) {
    %c0_i32 = arith.constant 0 : i32
    %c0_i32_0 = arith.constant 0 : i32
    return %arg0, %c0_i32 : i32, i32
  }
}

</mosaic_0001>

<llo_original>
// kernel: squeeze.31
$region0: #{squeeze.31}
  %s0 = inlined_call_operand.vmem [shape: f32[1,8,4], index: 0, kind: input, shape index: {}]
  %s1 = inlined_call_operand.vmem [shape: f32[32], index: 1, kind: output, shape index: {}]
  $region1: #{squeeze.31} parent=0
    #allocation0 [shape = 'u8[4096]{0}', space=vmem, size = 0x1000, scoped, tag = 'scoped mem for output reshape']
    %v2 = vld [vmem:[%s0] sm:$0x1]
    %vm3 = vcmask 31744
    %4 = vst.msk [vmem:[#allocation0] sm:$0x1] %vm3, %v2
    %s5 = scalar_lea.vmem %s0, 7
    %v6 = vld [vmem:[%s5] sm:$0x1]
    %7 = vrot.lane.b32.xlu0 %v6, 28
    %v8 = vpop.permute.xlu0 %7
    %vm9 = vcmask 261344
    %10 = vst.msk [vmem:[#allocation0] sm:$0x1] %vm9, %v8
    %s11 = scalar_lea.vmem %s0, 6
    %v12 = vld [vmem:[%s11] sm:$0x1]
    %13 = vrot.lane.b32.xlu0 %v12, 24
    %v14 = vpop.permute.xlu0 %13
    %vm15 = vcmask 228544
    %16 = vst.msk [vmem:[#allocation0] sm:$0x1] %vm15, %v14
    %s17 = scalar_lea.vmem %s0, 5
    %v18 = vld [vmem:[%s17] sm:$0x1]
    %19 = vrot.lane.b32.xlu0 %v18, 20
    %v20 = vpop.permute.xlu0 %19
    %vm21 = vcmask 195744
    %22 = vst.msk [vmem:[#allocation0] sm:$0x1] %vm21, %v20
    %s23 = scalar_lea.vmem %s0, 4
    %v24 = vld [vmem:[%s23] sm:$0x1]
    %25 = vrot.lane.b32.xlu0 %v24, 16
    %v26 = vpop.permute.xlu0 %25
    %vm27 = vcmask 162944
    %28 = vst.msk [vmem:[#allocation0] sm:$0x1] %vm27, %v26
    %s29 = scalar_lea.vmem %s0, 3
    %v30 = vld [vmem:[%s29] sm:$0x1]
    %31 = vrot.lane.b32.xlu0 %v30, 12
    %v32 = vpop.permute.xlu0 %31
    %vm33 = vcmask 130144
    %34 = vst.msk [vmem:[#allocation0] sm:$0x1] %vm33, %v32
    %s35 = scalar_lea.vmem %s0, 2
    %v36 = vld [vmem:[%s35] sm:$0x1]
    %37 = vrot.lane.b32.xlu0 %v36, 8
    %v38 = vpop.permute.xlu0 %37
    %vm39 = vcmask 97344
    %40 = vst.msk [vmem:[#allocation0] sm:$0x1] %vm39, %v38
    %s41 = scalar_lea.vmem %s0, 1
    %v42 = vld [vmem:[%s41] sm:$0x1]
    %43 = vrot.lane.b32.xlu0 %v42, 4
    %v44 = vpop.permute.xlu0 %43
    %vm45 = vcmask 64544
    %46 = vst.msk [vmem:[#allocation0] sm:$0x1] %vm45, %v44
    %s48 = ssub.s32 2, 1
    %v49 = vld [vmem:[#allocation0] sm:%s48]
    %s51 = ssub.s32 2, 1
    %52 = vst [vmem:[%s1] sm:%s51] %v49

// kernel: fast_rcnn_target_maker.1
$region0: #{fast_rcnn_target_maker.1}
  #allocation0 [shape = 'u32[]', space=smem, size = 0x4, offset = 0x4, fixed_abs, tag = 'smem constant byte address 0x4 - core index']
  #allocation1 [shape = 'u32[72,128]{1,0:T(1,128)}', space=vmem, size = 0x9000, scoped, tag = 'internal scratch']
  %s0 = inlined_call_operand.vmem [shape: f32[32], index: 0, kind: input, shape index: {}]
  %s1 = inlined_call_operand.vmem [shape: f32[4,16,128], index: 1, kind: input, shape index: {}]
  %s2 = inlined_call_operand.vmem [shape: f32[16,128], index: 2, kind: output, shape index: {0}]
  %s3 = inlined_call_operand.vmem [shape: s32[16,128], index: 3, kind: output, shape index: {1}]
  %4 = xla_tuple %s2, %s3
  %s5 = sld [smem:[#allocation0]]
  $region91: #{fast_rcnn_target_maker.1} parent=0
    _
  %s7 = ssub.s32 1, %s5
  %s8 = scalar_select 0, %s7, %s5
  $region1: #{fast_rcnn_target_maker.1} parent=0
    #allocation2 [shape = 'u8[512]{0}', space=smem, size = 0x200, scoped, tag = 'input window, operand 0, single buffered']
    #allocation3 [shape = 's32[2]{0}', space=sflag, size = 0x8, scoped, tag = 'scoped memory for fast_rcnn_target_maker.1']
    #allocation4 [shape = 'u8[32768]{0}', space=vmem, size = 0x8000, scoped, tag = 'input window, operand 1']
    %9 = vsyncpa [#allocation3], 0
    loop: start=0, step=1, limit=4
    $region2: #{fast_rcnn_target_maker.1} parent=1 // loop_pre_header
      _
    $region3: #{fast_rcnn_target_maker.1} parent=1 // loop_header
      %s11 = sphi 0, %s15
      %p12 = scmp.ge.s32.totalorder %s11, 4
      %s19 = sphi 0, %s19
      %s21 = sphi 0, %s19
      %s22 = sphi 0, %s21
      %s36 = sphi 0, %s22
      %s42 = sphi 0, %s44
      %s45 = sphi 0, %s42
      %s46 = sphi 0, %s45
      %s62 = sphi 0, %s46
      %s68 = sphi 0, %s70
      %s71 = sphi 0, %s68
      %s72 = sphi 0, %s71
      %s88 = sphi 0, %s72
      %s94 = sphi 0, %s96
      %s97 = sphi 0, %s94
      %s98 = sphi 0, %s97
      %s114 = sphi 0, %s98
    $region4: #{fast_rcnn_target_maker.1} parent=1 // loop_header_branch
      %14 = sbr.rel (%p12) target = $region8
    $region5: #{fast_rcnn_target_maker.1} parent=1 // loop_body
      %s16 = ssub.s32 %s11, 1
      %s17 = ssub.s32 %s11, 2
      %s18 = sadd.s32 %s11, 1
      %s20 = sadd.s32 %s19, 1
      %p23 = scmp.eq.s32.totalorder %s11, 1
      %p24 = scmp.ne.s32.totalorder %s19, %s21
      %p25 = scmp.eq.s32.totalorder %s11, 0
      %p26 = por %p24, %p25
      %p27 = scmp.ne.s32.totalorder %s19, %s21
      %p28 = scmp.eq.s32.totalorder %s16, 1
      %p29 = por %p27, %p28
      %p30 = scmp.ne.s32.totalorder %s21, %s22
      %p31 = scmp.eq.s32.totalorder %s16, 0
      %p32 = por %p30, %p31
      %p33 = scmp.ne.s32.totalorder %s21, %s22
      %p34 = scmp.eq.s32.totalorder %s17, 1
      %p35 = por %p33, %p34
      %p37 = scmp.ne.s32.totalorder %s22, %s36
      %p38 = scmp.eq.s32.totalorder %s17, 0
      %p39 = por %p37, %p38
      %s40 = ssub.s32 %s11, %s18
      %p41 = scmp.eq.s32.totalorder %s40, 0
      %s43 = sadd.s32 %s42, 1
      %s44 = scalar_select %p41, %s42, %s43
      %p47 = pneg %p41
      %p48 = scmp.eq.s32.totalorder %s11, 1
      %p49 = por %p47, %p48
      %p50 = scmp.ne.s32.totalorder %s42, %s45
      %p51 = scmp.eq.s32.totalorder %s11, 0
      %p52 = por %p50, %p51
      %p53 = scmp.ne.s32.totalorder %s42, %s45
      %p54 = scmp.eq.s32.totalorder %s16, 1
      %p55 = por %p53, %p54
      %p56 = scmp.ne.s32.totalorder %s45, %s46
      %p57 = scmp.eq.s32.totalorder %s16, 0
      %p58 = por %p56, %p57
      %p59 = scmp.ne.s32.totalorder %s45, %s46
      %p60 = scmp.eq.s32.totalorder %s17, 1
      %p61 = por %p59, %p60
      %p63 = scmp.ne.s32.totalorder %s46, %s62
      %p64 = scmp.eq.s32.totalorder %s17, 0
      %p65 = por %p63, %p64
      %s66 = ssub.s32 %s11, %s18
      %p67 = scmp.eq.s32.totalorder %s66, 0
      %s69 = sadd.s32 %s68, 1
      %s70 = scalar_select %p67, %s68, %s69
      %p73 = pneg %p67
      %p74 = scmp.eq.s32.totalorder %s11, 1
      %p75 = por %p73, %p74
      %p76 = scmp.ne.s32.totalorder %s68, %s71
      %p77 = scmp.eq.s32.totalorder %s11, 0
      %p78 = por %p76, %p77
      %p79 = scmp.ne.s32.totalorder %s68, %s71
      %p80 = scmp.eq.s32.totalorder %s16, 1
      %p81 = por %p79, %p80
      %p82 = scmp.ne.s32.totalorder %s71, %s72
      %p83 = scmp.eq.s32.totalorder %s16, 0
      %p84 = por %p82, %p83
      %p85 = scmp.ne.s32.totalorder %s71, %s72
      %p86 = scmp.eq.s32.totalorder %s17, 1
      %p87 = por %p85, %p86
      %p89 = scmp.ne.s32.totalorder %s72, %s88
      %p90 = scmp.eq.s32.totalorder %s17, 0
      %p91 = por %p89, %p90
      %s92 = ssub.s32 %s11, %s18
      %p93 = scmp.eq.s32.totalorder %s92, 0
      %s95 = sadd.s32 %s94, 1
      %s96 = scalar_select %p93, %s94, %s95
      %p99 = pneg %p93
      %p100 = scmp.eq.s32.totalorder %s11, 1
      %p101 = por %p99, %p100
      %p102 = scmp.ne.s32.totalorder %s94, %s97
      %p103 = scmp.eq.s32.totalorder %s11, 0
      %p104 = por %p102, %p103
      %p105 = scmp.ne.s32.totalorder %s94, %s97
      %p106 = scmp.eq.s32.totalorder %s16, 1
      %p107 = por %p105, %p106
      %p108 = scmp.ne.s32.totalorder %s97, %s98
      %p109 = scmp.eq.s32.totalorder %s16, 0
      %p110 = por %p108, %p109
      %p111 = scmp.ne.s32.totalorder %s97, %s98
      %p112 = scmp.eq.s32.totalorder %s17, 1
      %p113 = por %p111, %p112
      %p115 = scmp.ne.s32.totalorder %s98, %s114
      %p116 = scmp.eq.s32.totalorder %s17, 0
      %p117 = por %p115, %p116
      %p118 = scmp.le.s32.totalorder 1, %s11
      %p119 = scmp.lt.s32.totalorder %s11, 3
      %p120 = pnand %p118, %p119
      %p121 = pneg %p120
      // Predicated region
      $region9: #{fast_rcnn_target_maker.1} parent=5 // pred_check
        _
      $region10: #{fast_rcnn_target_maker.1} parent=5 // pred_check_branch
        %123 = sbr.rel (%p120) target = $region12
      $region11: #{fast_rcnn_target_maker.1} parent=5 // pred_region
        %s124 = ssub.s32 %s11, 1
        // Predicated region
        $region13: #{fast_rcnn_target_maker.1} parent=11 // pred_check
          %p125 = pneg %p32
        $region14: #{fast_rcnn_target_maker.1} parent=11 // pred_check_branch
          %127 = sbr.rel (%p125) target = $region16
        $region15: #{fast_rcnn_target_maker.1} parent=11 // pred_region
          %129 = vsyncadd [#allocation3], 0
          %s131 = sshll.u32 %s0, 4
          %s132 = int_to_ptr.vmem [resolvable:$true] %s131
          %134 = dma.vmem_to_smem %s132, 16, [#allocation2], [#allocation3]
        $region16: #{fast_rcnn_target_maker.1} parent=11 // pred_fallthru
          _
      $region12: #{fast_rcnn_target_maker.1} parent=5 // pred_fallthru
        _
      %p135 = scmp.lt.s32.totalorder %s11, 2
      // Predicated region
      $region17: #{fast_rcnn_target_maker.1} parent=5 // pred_check
        %p136 = pneg %p135
      $region18: #{fast_rcnn_target_maker.1} parent=5 // pred_check_branch
        %138 = sbr.rel (%p136) target = $region20
      $region19: #{fast_rcnn_target_maker.1} parent=5 // pred_region
        // Predicated region
        $region21: #{fast_rcnn_target_maker.1} parent=19 // pred_check
          %p139 = pneg %p52
        $region22: #{fast_rcnn_target_maker.1} parent=19 // pred_check_branch
          %141 = sbr.rel (%p139) target = $region24
        $region23: #{fast_rcnn_target_maker.1} parent=19 // pred_region
          %s142 = sand.u32 %s42, 1
          %s143 = sand.u32 %s42, 1
          %s144 = smul.addr %s143, 32
          %s145 = scalar_lea.vmem [#allocation4], %s144
          %s146 = smul.addr %s11, 8
          %s147 = scalar_lea.vmem %s1, %s146
          // Predicated region
          $region25: #{fast_rcnn_target_maker.1} parent=23 // pred_check
            _
          $region26: #{fast_rcnn_target_maker.1} parent=23 // pred_check_branch
            %149 = sbr.rel (0) target = $region28
          $region27: #{fast_rcnn_target_maker.1} parent=23 // pred_region
            // Predicated region
            $region29: #{fast_rcnn_target_maker.1} parent=27 // pred_check
              _
            $region30: #{fast_rcnn_target_maker.1} parent=27 // pred_check_branch
              %151 = sbr.rel (0) target = $region32
            $region31: #{fast_rcnn_target_maker.1} parent=27 // pred_region
              // Predicated region
              $region44: #{fast_rcnn_target_maker.1} parent=31 // pred_check
                _
              $region45: #{fast_rcnn_target_maker.1} parent=31 // pred_check_branch
                %173 = sbr.rel (0) target = $region47
              $region46: #{fast_rcnn_target_maker.1} parent=31 // pred_region
                loop: start=0, step=1, limit=1
                $region48: #{fast_rcnn_target_maker.1} parent=46 // loop_pre_header
                  _
                $region49: #{fast_rcnn_target_maker.1} parent=46 // loop_header
                  %s175 = sphi 0, %s179
                  %p176 = scmp.ge.s32.totalorder %s175, 1
                  %s180 = sphi %s147, %s147
                  %s181 = sphi %s145, %s145
                $region50: #{fast_rcnn_target_maker.1} parent=46 // loop_header_branch
                  %178 = sbr.rel (%p176) target = $region54
                $region51: #{fast_rcnn_target_maker.1} parent=46 // loop_body
                  %v182 = vld [vmem:[%s180] sm:$0xff]
                  %183 = vst [vmem:[%s181] sm:$0xff] %v182
                  %v184 = vld [vmem:[%s180 + $0x10] sm:$0xff]
                  %185 = vst [vmem:[%s181 + $0x8] sm:$0xff] %v184
                  %v186 = vld [vmem:[%s180 + $0x20] sm:$0xff]
                  %187 = vst [vmem:[%s181 + $0x10] sm:$0xff] %v186
                  %v188 = vld [vmem:[%s180 + $0x30] sm:$0xff]
                  %189 = vst [vmem:[%s181 + $0x18] sm:$0xff] %v188
                $region52: #{fast_rcnn_target_maker.1} parent=46 // loop_footer
                  %s179 = sadd.s32 1, %s175
                $region53: #{fast_rcnn_target_maker.1} parent=46 // loop_footer_branch
                  %174 = sbr.rel target = $region49
                $region54: #{fast_rcnn_target_maker.1} parent=46 // loop_exit
                  _
              $region47: #{fast_rcnn_target_maker.1} parent=31 // pred_fallthru
                _
              // Predicated region
              $region55: #{fast_rcnn_target_maker.1} parent=31 // pred_check
                _
              $region56: #{fast_rcnn_target_maker.1} parent=31 // pred_check_branch
                %191 = sbr.rel target = $region58
              $region57: #{fast_rcnn_target_maker.1} parent=31 // pred_region
                _
              $region58: #{fast_rcnn_target_maker.1} parent=31 // pred_fallthru
                _
            $region32: #{fast_rcnn_target_maker.1} parent=27 // pred_fallthru
              _
            // Predicated region
            $region33: #{fast_rcnn_target_maker.1} parent=27 // pred_check
              _
            $region34: #{fast_rcnn_target_maker.1} parent=27 // pred_check_branch
              %153 = sbr.rel target = $region36
            $region35: #{fast_rcnn_target_maker.1} parent=27 // pred_region
              %s155 = ssub.s32 256, 1
              loop: start=0, step=1, limit=1
              $region37: #{fast_rcnn_target_maker.1} parent=35 // loop_pre_header
                _
              $region38: #{fast_rcnn_target_maker.1} parent=35 // loop_header
                %s157 = sphi 0, %s161
                %p158 = scmp.ge.s32.totalorder %s157, 1
                %s162 = sphi %s147, %s147
                %s163 = sphi %s145, %s145
              $region39: #{fast_rcnn_target_maker.1} parent=35 // loop_header_branch
                %160 = sbr.rel (%p158) target = $region43
              $region40: #{fast_rcnn_target_maker.1} parent=35 // loop_body
                %v164 = vld [vmem:[%s162] sm:%s155]
                %165 = vst [vmem:[%s163] sm:%s155] %v164
                %v166 = vld [vmem:[%s162 + $0x10] sm:%s155]
                %167 = vst [vmem:[%s163 + $0x8] sm:%s155] %v166
                %v168 = vld [vmem:[%s162 + $0x20] sm:%s155]
                %169 = vst [vmem:[%s163 + $0x10] sm:%s155] %v168
                %v170 = vld [vmem:[%s162 + $0x30] sm:%s155]
                %171 = vst [vmem:[%s163 + $0x18] sm:%s155] %v170
              $region41: #{fast_rcnn_target_maker.1} parent=35 // loop_footer
                %s161 = sadd.s32 1, %s157
              $region42: #{fast_rcnn_target_maker.1} parent=35 // loop_footer_branch
                %156 = sbr.rel target = $region38
              $region43: #{fast_rcnn_target_maker.1} parent=35 // loop_exit
                _
            $region36: #{fast_rcnn_target_maker.1} parent=27 // pred_fallthru
              _
          $region28: #{fast_rcnn_target_maker.1} parent=23 // pred_fallthru
            _
          %192 = vnop
        $region24: #{fast_rcnn_target_maker.1} parent=19 // pred_fallthru
          _
      $region20: #{fast_rcnn_target_maker.1} parent=5 // pred_fallthru
        _
      %p193 = scmp.le.s32.totalorder 1, %s11
      %p194 = scmp.lt.s32.totalorder %s11, 3
      %p195 = pnand %p193, %p194
      %p196 = pneg %p195
      // Predicated region
      $region59: #{fast_rcnn_target_maker.1} parent=5 // pred_check
        _
      $region60: #{fast_rcnn_target_maker.1} parent=5 // pred_check_branch
        %198 = sbr.rel (%p195) target = $region62
      $region61: #{fast_rcnn_target_maker.1} parent=5 // pred_region
        %s199 = ssub.s32 %s11, 1
        // Predicated region
        $region63: #{fast_rcnn_target_maker.1} parent=61 // pred_check
          %p200 = pneg %p32
        $region64: #{fast_rcnn_target_maker.1} parent=61 // pred_check_branch
          %202 = sbr.rel (%p200) target = $region66
        $region65: #{fast_rcnn_target_maker.1} parent=61 // pred_region
          %204 = dma.done [#allocation3], 16
        $region66: #{fast_rcnn_target_maker.1} parent=61 // pred_fallthru
          _
        %s205 = sand.u32 %s45, 1
        %s206 = sand.u32 %s45, 1
        %s207 = smul.addr %s206, 32
        %s208 = scalar_lea.vmem [#allocation4], %s207
        // Predicated region
        $region67: #{fast_rcnn_target_maker.1} parent=61 // pred_check
          %p209 = pneg %p58
        $region68: #{fast_rcnn_target_maker.1} parent=61 // pred_check_branch
          %211 = sbr.rel (%p209) target = $region70
        $region69: #{fast_rcnn_target_maker.1} parent=61 // pred_region
          _
        $region70: #{fast_rcnn_target_maker.1} parent=61 // pred_fallthru
          _
        %212 = sfence
        %p213 = pneg %p32
        %p214 = pneg %p29
        %s215 = sand.u32 %s45, 1
        %s216 = sand.u32 %s45, 1
        %s217 = smul.addr %s216, 32
        %s218 = scalar_lea.vmem [#allocation4], %s217
        %p219 = pneg %p58
        %p220 = pneg %p55
        %p221 = pneg %p84
        %p222 = pneg %p81
        %p223 = scmp.lt.s32.totalorder %s16, 1
        %s224 = scalar_select %p223, %s16, 1
        %s225 = smul.addr %s224, 8
        %s226 = scalar_lea.vmem %s2, %s225
        %p227 = pneg %p110
        %p228 = pneg %p107
        %p229 = scmp.lt.s32.totalorder %s16, 1
        %s230 = scalar_select %p229, %s16, 1
        %s231 = smul.addr %s230, 8
        %s232 = scalar_lea.vmem %s3, %s231
        %p233 = scmp.lt.s32.totalorder %s16, 1
        %s234 = scalar_select %p233, %s16, 1
        %s235 = smul.addr %s234, 8
        %s236 = scalar_lea.vmem %s2, %s235
        %p237 = scmp.lt.s32.totalorder %s16, 1
        %s238 = scalar_select %p237, %s16, 1
        %s239 = smul.addr %s238, 8
        %s240 = scalar_lea.vmem %s3, %s239
        %v241 = vld [vmem:[%s208] sm:$0xff]
        %s242 = scalar_lea.vmem %s208, 8 [#allocation4]
        %v243 = vld [vmem:[%s242] sm:$0xff]
        %s244 = scalar_lea.vmem %s208, 16 [#allocation4]
        %v245 = vld [vmem:[%s244] sm:$0xff]
        %s246 = scalar_lea.vmem %s208, 24 [#allocation4]
        %v247 = vld [vmem:[%s246] sm:$0xff]
        %v248 = vsub.f32 %v245, %v241
        %v249 = vsub.f32 %v247, %v243
        %v250 = vmul.f32 %v248, %v249
        %s251 = sld [smem:[#allocation2]]
        %s252 = sld [smem:[#allocation2 + $0x1]]
        %s253 = sld [smem:[#allocation2 + $0x2]]
        %s254 = sld [smem:[#allocation2 + $0x3]]
        %s255 = ssub.f32 %s253, %s251
        %s256 = ssub.f32 %s254, %s252
        %s257 = smul.f32 %s255, %s256
        %v258 = vstv %s253
        %v259 = vmin.f32 %v245, %v258
        %v260 = vstv %s251
        %v261 = vmax.f32 %v241, %v260
        %v262 = vsub.f32 %v259, %v261
        %v263 = vmax.f32 %v262, 0.0
        %v264 = vstv %s254
        %v265 = vmin.f32 %v247, %v264
        %v266 = vstv %s252
        %v267 = vmax.f32 %v243, %v266
        %v268 = vsub.f32 %v265, %v267
        %v269 = vmax.f32 %v268, 0.0
        %v270 = vmul.f32 %v263, %v269
        %v271 = vstv %s257
        %v272 = vadd.f32 %v250, %v271
        %v273 = vsub.f32 %v272, %v270
        %v274 = vmul.f32 %v273, 0.0
        %vm275 = vcmp.gt.f32.partialorder %v270, %v274
        %v276 = vsel %vm275, %v270, 0.0
        %v277 = vsel %vm275, %v273, 1.0
        %s278 = sld [smem:[#allocation2 + $0x4]]
        %s279 = sld [smem:[#allocation2 + $0x5]]
        %s280 = sld [smem:[#allocation2 + $0x6]]
        %s281 = sld [smem:[#allocation2 + $0x7]]
        %s282 = ssub.f32 %s280, %s278
        %s283 = ssub.f32 %s281, %s279
        %s284 = smul.f32 %s282, %s283
        %v285 = vstv %s280
        %v286 = vmin.f32 %v245, %v285
        %v287 = vstv %s278
        %v288 = vmax.f32 %v241, %v287
        %v289 = vsub.f32 %v286, %v288
        %v290 = vmax.f32 %v289, 0.0
        %v291 = vstv %s281
        %v292 = vmin.f32 %v247, %v291
        %v293 = vstv %s279
        %v294 = vmax.f32 %v243, %v293
        %v295 = vsub.f32 %v292, %v294
        %v296 = vmax.f32 %v295, 0.0
        %v297 = vmul.f32 %v290, %v296
        %v298 = vstv %s284
        %v299 = vadd.f32 %v250, %v298
        %v300 = vsub.f32 %v299, %v297
        %v301 = vmul.f32 %v297, %v277
        %v302 = vmul.f32 %v276, %v300
        %vm303 = vcmp.gt.f32.partialorder %v301, %v302
        %v304 = vsel %vm303, %v297, %v276
        %v305 = vsel %vm303, %v300, %v277
        %v306 = vsel %vm303, 1, 0
        %s307 = sld [smem:[#allocation2 + $0x8]]
        %s308 = sld [smem:[#allocation2 + $0x9]]
        %s309 = sld [smem:[#allocation2 + $0xa]]
        %s310 = sld [smem:[#allocation2 + $0xb]]
        %s311 = ssub.f32 %s309, %s307
        %s312 = ssub.f32 %s310, %s308
        %s313 = smul.f32 %s311, %s312
        %v314 = vstv %s309
        %v315 = vmin.f32 %v245, %v314
        %v316 = vstv %s307
        %v317 = vmax.f32 %v241, %v316
        %v318 = vsub.f32 %v315, %v317
        %v319 = vmax.f32 %v318, 0.0
        %v320 = vstv %s310
        %v321 = vmin.f32 %v247, %v320
        %v322 = vstv %s308
        %v323 = vmax.f32 %v243, %v322
        %v324 = vsub.f32 %v321, %v323
        %v325 = vmax.f32 %v324, 0.0
        %v326 = vmul.f32 %v319, %v325
        %v327 = vstv %s313
        %v328 = vadd.f32 %v250, %v327
        %v329 = vsub.f32 %v328, %v326
        %v330 = vmul.f32 %v326, %v305
        %v331 = vmul.f32 %v304, %v329
        %vm332 = vcmp.gt.f32.partialorder %v330, %v331
        %v333 = vsel %vm332, %v326, %v304
        %v334 = vsel %vm332, %v329, %v305
        %v335 = vsel %vm332, 2, %v306
        %s336 = sld [smem:[#allocation2 + $0xc]]
        %s337 = sld [smem:[#allocation2 + $0xd]]
        %s338 = sld [smem:[#allocation2 + $0xe]]
        %s339 = sld [smem:[#allocation2 + $0xf]]
        %s340 = ssub.f32 %s338, %s336
        %s341 = ssub.f32 %s339, %s337
        %s342 = smul.f32 %s340, %s341
        %v343 = vstv %s338
        %v344 = vmin.f32 %v245, %v343
        %v345 = vstv %s336
        %v346 = vmax.f32 %v241, %v345
        %v347 = vsub.f32 %v344, %v346
        %v348 = vmax.f32 %v347, 0.0
        %v349 = vstv %s339
        %v350 = vmin.f32 %v247, %v349
        %v351 = vstv %s337
        %v352 = vmax.f32 %v243, %v351
        %v353 = vsub.f32 %v350, %v352
        %v354 = vmax.f32 %v353, 0.0
        %v355 = vmul.f32 %v348, %v354
        %v356 = vstv %s342
        %v357 = vadd.f32 %v250, %v356
        %v358 = vsub.f32 %v357, %v355
        %v359 = vmul.f32 %v355, %v334
        %v360 = vmul.f32 %v333, %v358
        %vm361 = vcmp.gt.f32.partialorder %v359, %v360
        %v362 = vsel %vm361, %v355, %v333
        %v363 = vsel %vm361, %v358, %v334
        %v364 = vsel %vm361, 3, %v335
        %s365 = sld [smem:[#allocation2 + $0x10]]
        %s366 = sld [smem:[#allocation2 + $0x11]]
        %s367 = sld [smem:[#allocation2 + $0x12]]
        %s368 = sld [smem:[#allocation2 + $0x13]]
        %s369 = ssub.f32 %s367, %s365
        %s370 = ssub.f32 %s368, %s366
        %s371 = smul.f32 %s369, %s370
        %v372 = vstv %s367
        %v373 = vmin.f32 %v245, %v372
        %v374 = vstv %s365
        %v375 = vmax.f32 %v241, %v374
        %v376 = vsub.f32 %v373, %v375
        %v377 = vmax.f32 %v376, 0.0
        %v378 = vstv %s368
        %v379 = vmin.f32 %v247, %v378
        %v380 = vstv %s366
        %v381 = vmax.f32 %v243, %v380
        %v382 = vsub.f32 %v379, %v381
        %v383 = vmax.f32 %v382, 0.0
        %v384 = vmul.f32 %v377, %v383
        %v385 = vstv %s371
        %v386 = vadd.f32 %v250, %v385
        %v387 = vsub.f32 %v386, %v384
        %v388 = vmul.f32 %v384, %v363
        %v389 = vmul.f32 %v362, %v387
        %vm390 = vcmp.gt.f32.partialorder %v388, %v389
        %v391 = vsel %vm390, %v384, %v362
        %v392 = vsel %vm390, %v387, %v363
        %v393 = vsel %vm390, 4, %v364
        %s394 = sld [smem:[#allocation2 + $0x14]]
        %s395 = sld [smem:[#allocation2 + $0x15]]
        %s396 = sld [smem:[#allocation2 + $0x16]]
        %s397 = sld [smem:[#allocation2 + $0x17]]
        %s398 = ssub.f32 %s396, %s394
        %s399 = ssub.f32 %s397, %s395
        %s400 = smul.f32 %s398, %s399
        %v401 = vstv %s396
        %v402 = vmin.f32 %v245, %v401
        %v403 = vstv %s394
        %v404 = vmax.f32 %v241, %v403
        %v405 = vsub.f32 %v402, %v404
        %v406 = vmax.f32 %v405, 0.0
        %v407 = vstv %s397
        %v408 = vmin.f32 %v247, %v407
        %v409 = vstv %s395
        %v410 = vmax.f32 %v243, %v409
        %v411 = vsub.f32 %v408, %v410
        %v412 = vmax.f32 %v411, 0.0
        %v413 = vmul.f32 %v406, %v412
        %v414 = vstv %s400
        %v415 = vadd.f32 %v250, %v414
        %v416 = vsub.f32 %v415, %v413
        %v417 = vmul.f32 %v413, %v392
        %v418 = vmul.f32 %v391, %v416
        %vm419 = vcmp.gt.f32.partialorder %v417, %v418
        %v420 = vsel %vm419, %v413, %v391
        %v421 = vsel %vm419, %v416, %v392
        %v422 = vsel %vm419, 5, %v393
        %s423 = sld [smem:[#allocation2 + $0x18]]
        %s424 = sld [smem:[#allocation2 + $0x19]]
        %s425 = sld [smem:[#allocation2 + $0x1a]]
        %s426 = sld [smem:[#allocation2 + $0x1b]]
        %s427 = ssub.f32 %s425, %s423
        %s428 = ssub.f32 %s426, %s424
        %s429 = smul.f32 %s427, %s428
        %v430 = vstv %s425
        %v431 = vmin.f32 %v245, %v430
        %v432 = vstv %s423
        %v433 = vmax.f32 %v241, %v432
        %v434 = vsub.f32 %v431, %v433
        %v435 = vmax.f32 %v434, 0.0
        %v436 = vstv %s426
        %v437 = vmin.f32 %v247, %v436
        %v438 = vstv %s424
        %v439 = vmax.f32 %v243, %v438
        %v440 = vsub.f32 %v437, %v439
        %v441 = vmax.f32 %v440, 0.0
        %v442 = vmul.f32 %v435, %v441
        %v443 = vstv %s429
        %v444 = vadd.f32 %v250, %v443
        %v445 = vsub.f32 %v444, %v442
        %v446 = vmul.f32 %v442, %v421
        %v447 = vmul.f32 %v420, %v445
        %vm448 = vcmp.gt.f32.partialorder %v446, %v447
        %v449 = vsel %vm448, %v442, %v420
        %v450 = vsel %vm448, %v445, %v421
        %v451 = vsel %vm448, 6, %v422
        %s452 = sld [smem:[#allocation2 + $0x1c]]
        %s453 = sld [smem:[#allocation2 + $0x1d]]
        %s454 = sld [smem:[#allocation2 + $0x1e]]
        %s455 = sld [smem:[#allocation2 + $0x1f]]
        %s456 = ssub.f32 %s454, %s452
        %s457 = ssub.f32 %s455, %s453
        %s458 = smul.f32 %s456, %s457
        %v459 = vstv %s454
        %v460 = vmin.f32 %v245, %v459
        %v461 = vstv %s452
        %v462 = vmax.f32 %v241, %v461
        %v463 = vsub.f32 %v460, %v462
        %v464 = vmax.f32 %v463, 0.0
        %v465 = vstv %s455
        %v466 = vmin.f32 %v247, %v465
        %v467 = vstv %s453
        %v468 = vmax.f32 %v243, %v467
        %v469 = vsub.f32 %v466, %v468
        %v470 = vmax.f32 %v469, 0.0
        %v471 = vmul.f32 %v464, %v470
        %v472 = vstv %s458
        %v473 = vadd.f32 %v250, %v472
        %v474 = vsub.f32 %v473, %v471
        %v475 = vmul.f32 %v471, %v450
        %v476 = vmul.f32 %v449, %v474
        %vm477 = vcmp.gt.f32.partialorder %v475, %v476
        %v478 = vsel %vm477, %v471, %v449
        %v479 = vsel %vm477, %v474, %v450
        %v480 = vsel %vm477, 7, %v451
        %v481 = vrcp.pop %v479
        %v482 = vmul.f32 %v479, %v481
        %v483 = vsub.f32 1.0, %v482
        %v484 = vmul.f32 %v481, %v483
        %v485 = vadd.f32 %v481, %v484
        %vm486 = vweird.f32 %v479
        %vm487 = vweird.f32 %v481
        %vm488 = vmor %vm486, %vm487
        %v489 = vsel %vm488, %v481, %v485
        %v490 = vand.u32 2147483647, %v479
        %vm491 = vcmp.eq.f32.partialorder %v490, 8.507059e+37
        %v492 = vand.u32 %v479, 2147483648
        %v493 = vor.u32 1.1754944e-38, %v492
        %v494 = vsel %vm491, %v493, %v489
        %v495 = vmul.f32 %v478, %v494
        %496 = vst [vmem:[%s236] sm:$0xff] %v495
        %497 = vst [vmem:[%s240] sm:$0xff] %v480
        %p498 = scmp.lt.s32.totalorder %s16, 1
        %s499 = scalar_select %p498, %s16, 1
        %s500 = smul.addr %s499, 8
        %s501 = scalar_lea.vmem %s2, %s500
        %p502 = scmp.lt.s32.totalorder %s16, 1
        %s503 = scalar_select %p502, %s16, 1
        %s504 = smul.addr %s503, 8
        %s505 = scalar_lea.vmem %s3, %s504
        // Predicated region
        $region71: #{fast_rcnn_target_maker.1} parent=61 // pred_check
          %p506 = pneg %p81
        $region72: #{fast_rcnn_target_maker.1} parent=61 // pred_check_branch
          %508 = sbr.rel (%p506) target = $region74
        $region73: #{fast_rcnn_target_maker.1} parent=61 // pred_region
          _
        $region74: #{fast_rcnn_target_maker.1} parent=61 // pred_fallthru
          _
        // Predicated region
        $region75: #{fast_rcnn_target_maker.1} parent=61 // pred_check
          %p509 = pneg %p107
        $region76: #{fast_rcnn_target_maker.1} parent=61 // pred_check_branch
          %511 = sbr.rel (%p509) target = $region78
        $region77: #{fast_rcnn_target_maker.1} parent=61 // pred_region
          _
        $region78: #{fast_rcnn_target_maker.1} parent=61 // pred_fallthru
          _
      $region62: #{fast_rcnn_target_maker.1} parent=5 // pred_fallthru
        _
      %p512 = scmp.le.s32.totalorder 2, %s11
      // Predicated region
      $region79: #{fast_rcnn_target_maker.1} parent=5 // pred_check
        %p513 = pneg %p512
      $region80: #{fast_rcnn_target_maker.1} parent=5 // pred_check_branch
        %515 = sbr.rel (%p513) target = $region82
      $region81: #{fast_rcnn_target_maker.1} parent=5 // pred_region
        %s516 = ssub.s32 %s11, 2
        // Predicated region
        $region83: #{fast_rcnn_target_maker.1} parent=81 // pred_check
          %p517 = pneg %p87
        $region84: #{fast_rcnn_target_maker.1} parent=81 // pred_check_branch
          %519 = sbr.rel (%p517) target = $region86
        $region85: #{fast_rcnn_target_maker.1} parent=81 // pred_region
          %p520 = scmp.lt.s32.totalorder %s17, 1
          %s521 = scalar_select %p520, %s17, 1
          %s522 = smul.addr %s521, 8
          %s523 = scalar_lea.vmem %s2, %s522
        $region86: #{fast_rcnn_target_maker.1} parent=81 // pred_fallthru
          _
        // Predicated region
        $region87: #{fast_rcnn_target_maker.1} parent=81 // pred_check
          %p524 = pneg %p113
        $region88: #{fast_rcnn_target_maker.1} parent=81 // pred_check_branch
          %526 = sbr.rel (%p524) target = $region90
        $region89: #{fast_rcnn_target_maker.1} parent=81 // pred_region
          %p527 = scmp.lt.s32.totalorder %s17, 1
          %s528 = scalar_select %p527, %s17, 1
          %s529 = smul.addr %s528, 8
          %s530 = scalar_lea.vmem %s3, %s529
        $region90: #{fast_rcnn_target_maker.1} parent=81 // pred_fallthru
          _
      $region82: #{fast_rcnn_target_maker.1} parent=5 // pred_fallthru
        _
    $region6: #{fast_rcnn_target_maker.1} parent=1 // loop_footer
      %s15 = sadd.s32 1, %s11
    $region7: #{fast_rcnn_target_maker.1} parent=1 // loop_footer_branch
      %10 = sbr.rel target = $region3
    $region8: #{fast_rcnn_target_maker.1} parent=1 // loop_exit
      _
    %531 = vsyncpa [#allocation3], 1
    %s532 = scalar_lea.sflag [#allocation3], 1
    %533 = vsyncpa %s532, 1

</llo_original>
